<compile_context>
chip_gen: v5e
topology: v5e:2x2
jax: 0.10.0
libtpu: 0.0.40
codegen_flags: <defaults>
</compile_context>

<pallas_src>
import jax
import jax.numpy as jnp
from jax.experimental import pallas as pl
from jax.experimental.pallas import tpu as pltpu


def _round_up(x, m):
    return ((x + m - 1) // m) * m


def _vmem_capacity_bytes():
    try:
        return int(pltpu.get_tpu_info().vmem_capacity_bytes)
    except Exception:
        return 64 * 1024 * 1024  # conservative fallback (v7x per-TC VMEM)


def _vmem_bytes(tm, tn, n_embd, x_isz, w_isz, o_isz):
    """Rough VMEM footprint: double-buffered streams + scratch + elementwise temps."""
    dbuf = 2 * (
        tm * n_embd * x_isz          # x tile
        + n_embd * 2 * tn * w_isz    # fused [Wg|Wu] tile
        + 8 * 2 * tn * 4             # [bg|bu] tile (f32, sublane padded)
        + tn * n_embd * w_isz        # W_down tile
        + 8 * n_embd * 4             # b_down tile (f32)
        + tm * n_embd * o_isz        # output tile
    )
    scratch = tm * n_embd * 4        # f32 accumulator
    temps = (
        tm * 2 * tn * 4              # f32 gu intermediate
        + tm * tn * 4                # f32 silu(gate) * up product
        + tm * tn * w_isz            # activation cast back to compute dtype
        + tm * n_embd * 4            # f32 partial result of the down matmul
    )
    return dbuf + scratch + temps


def mlp_kernel(x_ref, wgu_ref, bgu_ref, wd_ref, bd_ref, o_ref, acc_ref):
    """One (M tile, hidden tile) grid step.

    x_ref:   (tm, n_embd)        compute dtype
    wgu_ref: (1, n_embd, 2*tn)   columns [gate_tile | up_tile], compute dtype
    bgu_ref: (1, 1, 2*tn)        f32
    wd_ref:  (1, tn, n_embd)     compute dtype
    bd_ref:  (1, n_embd)         f32
    o_ref:   (tm, n_embd)        output dtype (resident across hidden axis)
    acc_ref: (tm, n_embd)        f32 scratch (resident across hidden axis)
    """
    h = pl.program_id(1)
    tn = wd_ref.shape[1]

    x = x_ref[...]
    # Fused gate/up projection: one MXU matmul, split in-register.
    gu = jnp.dot(x, wgu_ref[0], preferred_element_type=jnp.float32) + bgu_ref[0]
    gate = gu[:, :tn]
    up = gu[:, tn:]

    # SiLU(gate) * up on VPU/EUP (free slots while MXU is the binding unit).
    act = (gate * jax.nn.sigmoid(gate)) * up

    partial = jnp.dot(act.astype(x.dtype), wd_ref[0],
                      preferred_element_type=jnp.float32)

    @pl.when(h == 0)
    def _():
        acc_ref[...] = partial          # first step: direct write, no zero-init RMW

    @pl.when(h > 0)
    def _():
        acc_ref[...] += partial

    @pl.when(h == pl.num_programs(1) - 1)
    def _():
        o_ref[...] = (acc_ref[...] + bd_ref[...]).astype(o_ref.dtype)


def pack_mlp_params(w_gate, b_gate, w_up, b_up, w_down, b_down,
                    *, tile_n, compute_dtype):
    """One-time weight packing (call at parameter-prep time, NOT per forward).

    Weights are in PyTorch nn.Linear convention: (out_features, in_features).
    Returns (wgu, bgu, wd, bd) where
      wgu: (n_h, n_embd, 2*tn)  per-hidden-tile contiguous [W_gate^T | W_up^T]
      bgu: (n_h, 1, 2*tn)       f32
      wd:  (n_h, tn, n_embd)    per-hidden-tile contiguous W_down^T
      bd:  (1, n_embd)          f32
    The hidden dimension is zero-padded up to a multiple of tn.
    """
    hidden, n_embd = w_gate.shape
    tn = int(tile_n)
    n_h = _round_up(hidden, tn) // tn
    pad = n_h * tn - hidden

    wg_t = jnp.asarray(w_gate).T            # (n_embd, hidden)
    wu_t = jnp.asarray(w_up).T              # (n_embd, hidden)
    wd_t = jnp.asarray(w_down).T            # (hidden, n_embd)
    bg = jnp.asarray(b_gate)
    bu = jnp.asarray(b_up)
    if pad:
        wg_t = jnp.pad(wg_t, ((0, 0), (0, pad)))
        wu_t = jnp.pad(wu_t, ((0, 0), (0, pad)))
        wd_t = jnp.pad(wd_t, ((0, pad), (0, 0)))
        bg = jnp.pad(bg, (0, pad))
        bu = jnp.pad(bu, (0, pad))

    wgu = jnp.concatenate(
        [wg_t.reshape(n_embd, n_h, tn).transpose(1, 0, 2),
         wu_t.reshape(n_embd, n_h, tn).transpose(1, 0, 2)],
        axis=-1).astype(compute_dtype)                      # (n_h, n_embd, 2*tn)
    bgu = jnp.concatenate(
        [bg.reshape(n_h, 1, tn), bu.reshape(n_h, 1, tn)],
        axis=-1).astype(jnp.float32)                        # (n_h, 1, 2*tn)
    wd = wd_t.reshape(n_h, tn, n_embd).astype(compute_dtype)
    bd = jnp.asarray(b_down).reshape(1, n_embd).astype(jnp.float32)
    return wgu, bgu, wd, bd


def mlp_pallas_packed(x, wgu, bgu, wd, bd, *, tile_m=None):
    """Hot path: x [B, T, n_embd] + pre-packed weights -> [B, T, n_embd]."""
    B, T, n_embd = x.shape
    n_h, tn, _ = wd.shape
    out_dtype = x.dtype
    compute_dtype = wgu.dtype
    M = B * T

    cap = _vmem_capacity_bytes()
    budget = max(cap - (8 << 20), 24 << 20)     # headroom for compiler scratch

    # Tile selection: large enough to clear the weight-streaming roofline on
    # 128 MiB parts (v5e/v6e), capped for 64 MiB parts (v7x); tiny M (decode)
    # shrinks tm to round_up(M, 8) instead of padding to a huge tile.
    if tile_m is None:
        tile_m = 1024 if budget >= (96 << 20) else 512
    tm = max(8, min(_round_up(int(tile_m), 8), _round_up(M, 8)))

    x_isz = jnp.dtype(compute_dtype).itemsize
    w_isz = jnp.dtype(wgu.dtype).itemsize
    o_isz = jnp.dtype(out_dtype).itemsize
    while tm > 8 and _vmem_bytes(tm, tn, n_embd, x_isz, w_isz, o_isz) > budget:
        tm = max(8, _round_up(tm // 2, 8))

    M_pad = _round_up(M, tm)
    x2d = x.reshape(M, n_embd).astype(compute_dtype)
    if M_pad != M:
        x2d = jnp.pad(x2d, ((0, M_pad - M), (0, 0)))

    grid = (M_pad // tm, n_h)
    est = _vmem_bytes(tm, tn, n_embd, x_isz, w_isz, o_isz)
    vmem_limit = int(min(cap, max(est * 3 // 2, 32 << 20)))

    out2d = pl.pallas_call(
        mlp_kernel,
        out_shape=jax.ShapeDtypeStruct((M_pad, n_embd), out_dtype),
        grid_spec=pltpu.PrefetchScalarGridSpec(
            num_scalar_prefetch=0,
            grid=grid,
            in_specs=[
                pl.BlockSpec((tm, n_embd),        lambda i, h: (i, 0)),     # x
                pl.BlockSpec((1, n_embd, 2 * tn), lambda i, h: (h, 0, 0)),  # [Wg|Wu]
                pl.BlockSpec((1, 1, 2 * tn),      lambda i, h: (h, 0, 0)),  # [bg|bu]
                pl.BlockSpec((1, tn, n_embd),     lambda i, h: (h, 0, 0)),  # W_down
                pl.BlockSpec((1, n_embd),         lambda i, h: (0, 0)),     # b_down
            ],
            out_specs=pl.BlockSpec((tm, n_embd),  lambda i, h: (i, 0)),
            scratch_shapes=[pltpu.VMEM((tm, n_embd), jnp.float32)],
        ),
        compiler_params=pltpu.CompilerParams(
            dimension_semantics=("parallel", "arbitrary"),
            vmem_limit_bytes=vmem_limit),
    )(x2d, wgu, bgu, wd, bd)

    return out2d[:M].reshape(B, T, n_embd)


def mlp_pallas(x, w_gate, b_gate, w_up, b_up, w_down, b_down,
               *, tile_m=None, tile_n=None, compute_dtype=None):
    """Convenience wrapper: packs weights then calls the packed hot path.

    For real workloads call pack_mlp_params ONCE at parameter-prep time and use
    mlp_pallas_packed per forward (avoids rewriting weights in HBM every call).
    """
    hidden, n_embd = w_gate.shape
    compute_dtype = x.dtype if compute_dtype is None else jnp.dtype(compute_dtype)

    budget = max(_vmem_capacity_bytes() - (8 << 20), 24 << 20)
    if tile_n is None:
        tile_n = 512 if budget >= (96 << 20) else 256
    if hidden <= tile_n:
        # small hidden: single hidden tile (lane-aligned when possible)
        tn = hidden if hidden < 128 else _round_up(hidden, 128)
    else:
        # large hidden: MXU-aligned tile, hidden zero-padded to a multiple of tn
        tn = max(128, (int(tile_n) // 128) * 128)

    wgu, bgu, wd, bd = pack_mlp_params(
        w_gate, b_gate, w_up, b_up, w_down, b_down,
        tile_n=tn, compute_dtype=compute_dtype)
    return mlp_pallas_packed(x, wgu, bgu, wd, bd, tile_m=tile_m)


def mlp_ref(x, w_gate, b_gate, w_up, b_up, w_down, b_down):
    gate = x @ w_gate.T + b_gate
    up = x @ w_up.T + b_up
    swish = gate * jax.nn.sigmoid(gate)
    return (swish * up) @ w_down.T + b_down


if __name__ == "__main__":
    key = jax.random.PRNGKey(0)

    def lin_init(kw, kb, out_f, in_f):
        bound = 1.0 / jnp.sqrt(in_f)
        w = jax.random.uniform(kw, (out_f, in_f), jnp.float32, -bound, bound)
        b = jax.random.uniform(kb, (out_f,), jnp.float32, -bound, bound)
        return w, b

    # --- Test 1: small module-consistent shapes, f32 compute -----------------
    B, T, n_embd, hidden = 2, 8, 32, 64
    kx, k1, k2, k3, k4, k5, k6, key = jax.random.split(key, 8)
    x = jax.random.normal(kx, (B, T, n_embd), dtype=jnp.float32)
    w_gate, b_gate = lin_init(k1, k2, hidden, n_embd)   # up_proj_swish
    w_up,   b_up   = lin_init(k3, k4, hidden, n_embd)   # up_proj
    w_down, b_down = lin_init(k5, k6, n_embd, hidden)   # down_proj

    out = mlp_pallas(x, w_gate, b_gate, w_up, b_up, w_down, b_down)
    out = jax.block_until_ready(out)
    ref = mlp_ref(x, w_gate, b_gate, w_up, b_up, w_down, b_down)
    assert out.shape == (B, T, n_embd)
    assert jnp.allclose(out, ref, atol=1e-4, rtol=1e-4), "f32 mismatch vs reference"

    # --- Test 2: multi-tile grid (M and hidden), hidden padding, bf16 compute -
    B2, T2, n_embd2, hidden2 = 2, 8, 128, 320   # hidden2 % 128 != 0 -> zero-padded
    kx, k1, k2, k3, k4, k5, k6, key = jax.random.split(key, 8)
    x2 = jax.random.normal(kx, (B2, T2, n_embd2), dtype=jnp.float32)
    w_gate2, b_gate2 = lin_init(k1, k2, hidden2, n_embd2)
    w_up2,   b_up2   = lin_init(k3, k4, hidden2, n_embd2)
    w_down2, b_down2 = lin_init(k5, k6, n_embd2, hidden2)

    out2 = mlp_pallas(x2, w_gate2, b_gate2, w_up2, b_up2, w_down2, b_down2,
                      tile_m=8, tile_n=128, compute_dtype=jnp.bfloat16)
    out2 = jax.block_until_ready(out2)
    ref2 = mlp_ref(x2, w_gate2, b_gate2, w_up2, b_up2, w_down2, b_down2)
    assert out2.shape == (B2, T2, n_embd2)
    assert jnp.allclose(out2, ref2, atol=5e-2, rtol=5e-2), "bf16 mismatch vs reference"

    print("KERNEL_OK")
</pallas_src>

<mosaic_0001>
module attributes {stable_mosaic.version = 11 : i64} {
  func.func @mlp_kernel(%arg0: i32, %arg1: i32, %arg2: memref<16x32xf32, #tpu.memory_space<vmem>>, %arg3: memref<1x32x128xf32, #tpu.memory_space<vmem>>, %arg4: memref<1x1x128xf32, #tpu.memory_space<vmem>>, %arg5: memref<1x64x32xf32, #tpu.memory_space<vmem>>, %arg6: memref<1x32xf32, #tpu.memory_space<vmem>>, %arg7: memref<16x32xf32, #tpu.memory_space<vmem>>, %arg8: memref<16x32xf32, #tpu.memory_space<vmem>>) attributes {dimension_semantics = [#tpu.dimension_semantics<parallel>, #tpu.dimension_semantics<arbitrary>], iteration_bounds = array<i64: 1, 1>, scalar_prefetch = 0 : i64, scratch_operands = 1 : i64, tpu.core_type = #tpu.core_type<tc>, window_params = [{transform_indices = @transform_0, window_bounds = array<i64: 16, 32>}, {transform_indices = @transform_1, window_bounds = array<i64: 1, 32, 128>}, {transform_indices = @transform_2, window_bounds = array<i64: 1, 1, 128>}, {transform_indices = @transform_3, window_bounds = array<i64: 1, 64, 32>}, {pipeline_mode = #tpu.pipeline_mode<synchronous>, transform_indices = @transform_4, window_bounds = array<i64: 1, 32>}, {transform_indices = @transform_5, window_bounds = array<i64: 16, 32>}]} {
    %c0 = arith.constant 0 : index
    %c0_0 = arith.constant 0 : index
    %0 = vector.load %arg2[%c0, %c0_0] : memref<16x32xf32, #tpu.memory_space<vmem>>, vector<16x32xf32>
    %c0_1 = arith.constant 0 : index
    %c0_2 = arith.constant 0 : index
    %c0_3 = arith.constant 0 : index
    %1 = vector.load %arg3[%c0_1, %c0_2, %c0_3] : memref<1x32x128xf32, #tpu.memory_space<vmem>>, vector<1x32x128xf32>
    %2 = vector.shape_cast %1 : vector<1x32x128xf32> to vector<32x128xf32>
    %cst = arith.constant dense<0.000000e+00> : vector<16x128xf32>
    %3 = tpu.matmul %0, %2, %cst {dimension_numbers = #tpu.dot_dimension_numbers<[1], [0], [0], [1], [0, 0, 1, 1], [], []>} : vector<16x32xf32>, vector<32x128xf32>, vector<16x128xf32> -> vector<16x128xf32>
    %c0_4 = arith.constant 0 : index
    %c0_5 = arith.constant 0 : index
    %c0_6 = arith.constant 0 : index
    %4 = vector.load %arg4[%c0_4, %c0_5, %c0_6] : memref<1x1x128xf32, #tpu.memory_space<vmem>>, vector<1x1x128xf32>
    %5 = vector.shape_cast %4 : vector<1x1x128xf32> to vector<1x128xf32>
    %6 = vector.broadcast %5 : vector<1x128xf32> to vector<16x128xf32>
    %7 = arith.addf %3, %6 : vector<16x128xf32>
    %8 = vector.extract_strided_slice %7 {offsets = [0, 0], sizes = [16, 64], strides = [1, 1]} : vector<16x128xf32> to vector<16x64xf32>
    %9 = vector.extract_strided_slice %7 {offsets = [0, 64], sizes = [16, 64], strides = [1, 1]} : vector<16x128xf32> to vector<16x64xf32>
    %10 = arith.negf %8 : vector<16x64xf32>
    %11 = math.exp %10 : vector<16x64xf32>
    %cst_7 = arith.constant 1.000000e+00 : f32
    %12 = vector.broadcast %cst_7 : f32 to vector<16x64xf32>
    %13 = arith.addf %12, %11 : vector<16x64xf32>
    %14 = arith.divf %12, %13 : vector<16x64xf32>
    %15 = arith.mulf %8, %14 : vector<16x64xf32>
    %16 = arith.mulf %15, %9 : vector<16x64xf32>
    %c0_8 = arith.constant 0 : index
    %c0_9 = arith.constant 0 : index
    %c0_10 = arith.constant 0 : index
    %17 = vector.load %arg5[%c0_8, %c0_9, %c0_10] : memref<1x64x32xf32, #tpu.memory_space<vmem>>, vector<1x64x32xf32>
    %18 = vector.shape_cast %17 : vector<1x64x32xf32> to vector<64x32xf32>
    %cst_11 = arith.constant dense<0.000000e+00> : vector<16x32xf32>
    %19 = tpu.matmul %16, %18, %cst_11 {dimension_numbers = #tpu.dot_dimension_numbers<[1], [0], [0], [1], [0, 0, 1, 1], [], []>} : vector<16x64xf32>, vector<64x32xf32>, vector<16x32xf32> -> vector<16x32xf32>
    %c0_i32 = arith.constant 0 : i32
    %20 = arith.cmpi eq, %arg1, %c0_i32 : i32
    %21 = arith.extui %20 : i1 to i32
    %c0_i32_12 = arith.constant 0 : i32
    %22 = arith.cmpi ne, %21, %c0_i32_12 : i32
    scf.if %22 {
      %c0_17 = arith.constant 0 : index
      %c0_18 = arith.constant 0 : index
      %29 = vector.load %arg8[%c0_17, %c0_18] : memref<16x32xf32, #tpu.memory_space<vmem>>, vector<16x32xf32>
      tpu.vector_store %arg8[%c0_17, %c0_18], %19 {strides = array<i32>} : memref<16x32xf32, #tpu.memory_space<vmem>>, vector<16x32xf32>,
    } else {
    }
    %c0_i32_13 = arith.constant 0 : i32
    %23 = arith.cmpi sgt, %arg1, %c0_i32_13 : i32
    %24 = arith.extui %23 : i1 to i32
    %c0_i32_14 = arith.constant 0 : i32
    %25 = arith.cmpi ne, %24, %c0_i32_14 : i32
    scf.if %25 {
      %c0_17 = arith.constant 0 : index
      %c0_18 = arith.constant 0 : index
      %29 = vector.load %arg8[%c0_17, %c0_18] : memref<16x32xf32, #tpu.memory_space<vmem>>, vector<16x32xf32>
      %30 = arith.addf %29, %19 : vector<16x32xf32>
      %c0_19 = arith.constant 0 : index
      %c0_20 = arith.constant 0 : index
      %31 = vector.load %arg8[%c0_19, %c0_20] : memref<16x32xf32, #tpu.memory_space<vmem>>, vector<16x32xf32>
      tpu.vector_store %arg8[%c0_19, %c0_20], %30 {strides = array<i32>} : memref<16x32xf32, #tpu.memory_space<vmem>>, vector<16x32xf32>,
    } else {
    }
    %c0_i32_15 = arith.constant 0 : i32
    %26 = arith.cmpi eq, %arg1, %c0_i32_15 : i32
    %27 = arith.extui %26 : i1 to i32
    %c0_i32_16 = arith.constant 0 : i32
    %28 = arith.cmpi ne, %27, %c0_i32_16 : i32
    scf.if %28 {
      %c0_17 = arith.constant 0 : index
      %c0_18 = arith.constant 0 : index
      %29 = vector.load %arg8[%c0_17, %c0_18] : memref<16x32xf32, #tpu.memory_space<vmem>>, vector<16x32xf32>
      %c0_19 = arith.constant 0 : index
      %c0_20 = arith.constant 0 : index
      %30 = vector.load %arg6[%c0_19, %c0_20] : memref<1x32xf32, #tpu.memory_space<vmem>>, vector<1x32xf32>
      %31 = vector.broadcast %30 : vector<1x32xf32> to vector<16x32xf32>
      %32 = arith.addf %29, %31 : vector<16x32xf32>
      %c0_21 = arith.constant 0 : index
      %c0_22 = arith.constant 0 : index
      %33 = vector.load %arg7[%c0_21, %c0_22] : memref<16x32xf32, #tpu.memory_space<vmem>>, vector<16x32xf32>
      tpu.vector_store %arg7[%c0_21, %c0_22], %32 {strides = array<i32>} : memref<16x32xf32, #tpu.memory_space<vmem>>, vector<16x32xf32>,
    } else {
    }
    return
  }
  func.func @transform_0(%arg0: i32, %arg1: i32) -> (i32, i32) {
    %c0_i32 = arith.constant 0 : i32
    %c0_i32_0 = arith.constant 0 : i32
    return %arg0, %c0_i32 : i32, i32
  }
  func.func @transform_1(%arg0: i32, %arg1: i32) -> (i32, i32, i32) {
    %c0_i32 = arith.constant 0 : i32
    %c0_i32_0 = arith.constant 0 : i32
    %c0_i32_1 = arith.constant 0 : i32
    return %arg1, %c0_i32, %c0_i32_0 : i32, i32, i32
  }
  func.func @transform_2(%arg0: i32, %arg1: i32) -> (i32, i32, i32) {
    %c0_i32 = arith.constant 0 : i32
    %c0_i32_0 = arith.constant 0 : i32
    %c0_i32_1 = arith.constant 0 : i32
    return %arg1, %c0_i32, %c0_i32_0 : i32, i32, i32
  }
  func.func @transform_3(%arg0: i32, %arg1: i32) -> (i32, i32, i32) {
    %c0_i32 = arith.constant 0 : i32
    %c0_i32_0 = arith.constant 0 : i32
    %c0_i32_1 = arith.constant 0 : i32
    return %arg1, %c0_i32, %c0_i32_0 : i32, i32, i32
  }
  func.func @transform_4(%arg0: i32, %arg1: i32) -> (i32, i32) {
    %c0_i32 = arith.constant 0 : i32
    %c0_i32_0 = arith.constant 0 : i32
    %c0_i32_1 = arith.constant 0 : i32
    return %c0_i32, %c0_i32_0 : i32, i32
  }
  func.func @transform_5(%arg0: i32, %arg1: i32) -> (i32, i32) {
    %c0_i32 = arith.constant 0 : i32
    %c0_i32_0 = arith.constant 0 : i32
    return %arg0, %c0_i32 : i32, i32
  }
}

</mosaic_0001>

<llo_original>
// kernel: tpu_custom_call.1
$region0: #{tpu_custom_call.1}
  #allocation0 [shape = 'u32[]', space=smem, size = 0x4, offset = 0x4, fixed_abs, tag = 'smem constant byte address 0x4 - core index']
  #allocation1 [shape = 'u32[72,128]{1,0:T(1,128)}', space=vmem, size = 0x9000, scoped, tag = 'internal scratch']
  #allocation2 [shape = 'f32[16,32]{1,0:T(8,128)}', space=vmem, size = 0x2000, scoped, tag = 'scratch operand']
  %s0 = inlined_call_operand.vmem [shape: f32[16,32], index: 0, kind: input, shape index: {}]
  %s1 = inlined_call_operand.vmem [shape: f32[1,32,128], index: 1, kind: input, shape index: {}]
  %s2 = inlined_call_operand.vmem [shape: f32[1,1,128], index: 2, kind: input, shape index: {}]
  %s3 = inlined_call_operand.vmem [shape: f32[1,64,32], index: 3, kind: input, shape index: {}]
  %s4 = inlined_call_operand.vmem [shape: f32[1,32], index: 4, kind: input, shape index: {}]
  %s5 = inlined_call_operand.hbm [shape: f32[16,32], index: 5, kind: output, shape index: {}]
  %s6 = sld [smem:[#allocation0]]
  $region42: #{tpu_custom_call.1} parent=0
    _
  %s8 = ssub.s32 1, %s6
  %s9 = scalar_select 0, %s8, %s6
  $region1: #{tpu_custom_call.1} parent=0
    #allocation3 [shape = 'u8[8192]{0}', space=vmem, size = 0x2000, scoped, tag = 'output window, operand 0, single buffered']
    #allocation4 [shape = 's32[1]{0}', space=sflag, size = 0x4, scoped, tag = 'scoped memory for tpu_custom_call.1']
    %10 = vsyncpa [#allocation4], 0
    // Predicated region
    $region2: #{tpu_custom_call.1} parent=1 // pred_check
      _
    $region3: #{tpu_custom_call.1} parent=1 // pred_check_branch
      %12 = sbr.rel (0) target = $region5
    $region4: #{tpu_custom_call.1} parent=1 // pred_region
      _
    $region5: #{tpu_custom_call.1} parent=1 // pred_fallthru
      _
    // Predicated region
    $region6: #{tpu_custom_call.1} parent=1 // pred_check
      _
    $region7: #{tpu_custom_call.1} parent=1 // pred_check_branch
      %14 = sbr.rel (0) target = $region9
    $region8: #{tpu_custom_call.1} parent=1 // pred_region
      _
    $region9: #{tpu_custom_call.1} parent=1 // pred_fallthru
      _
    // Predicated region
    $region10: #{tpu_custom_call.1} parent=1 // pred_check
      _
    $region11: #{tpu_custom_call.1} parent=1 // pred_check_branch
      %16 = sbr.rel (0) target = $region13
    $region12: #{tpu_custom_call.1} parent=1 // pred_region
      _
    $region13: #{tpu_custom_call.1} parent=1 // pred_fallthru
      _
    // Predicated region
    $region14: #{tpu_custom_call.1} parent=1 // pred_check
      _
    $region15: #{tpu_custom_call.1} parent=1 // pred_check_branch
      %18 = sbr.rel (0) target = $region17
    $region16: #{tpu_custom_call.1} parent=1 // pred_region
      _
    $region17: #{tpu_custom_call.1} parent=1 // pred_fallthru
      _
    // Predicated region
    $region18: #{tpu_custom_call.1} parent=1 // pred_check
      _
    $region19: #{tpu_custom_call.1} parent=1 // pred_check_branch
      %20 = sbr.rel (0) target = $region21
    $region20: #{tpu_custom_call.1} parent=1 // pred_region
      _
    $region21: #{tpu_custom_call.1} parent=1 // pred_fallthru
      _
    %v21 = vld [vmem:[%s0] sm:$0xff]
    %v22 = vld [vmem:[%s0 + $0x8] sm:$0xff]
    %v23 = vld [vmem:[%s1] sm:$0xff]
    %v24 = vld [vmem:[%s1 + $0x8] sm:$0xff]
    %v25 = vld [vmem:[%s1 + $0x10] sm:$0xff]
    %v26 = vld [vmem:[%s1 + $0x18] sm:$0xff]
    %v27 = vld [vmem:[%s2] sm:$0x1]
    %v29 = vperm.slane %v27, 0
    %vm31 = vcmask 261120
    %v33 = vsel %vm31, %v21, 0
    %v36 = vsel %vm31, %v22, 0
    %38 = vmatpush.msra.mxu0 0.0
    %39 = vmatpush.msra.mxu0 0.0
    %40 = vmatpush.msra.mxu0 0.0
    %41 = vmatpush.msra.mxu0 0.0
    %42 = vmatpush.msra.mxu0 0.0
    %43 = vmatpush.msra.mxu0 0.0
    %44 = vmatpush.msra.mxu0 0.0
    %45 = vmatpush.msra.mxu0 0.0
    %46 = vmatpush.msra.mxu0 0.0
    %47 = vmatpush.msra.mxu0 0.0
    %48 = vmatpush.msra.mxu0 0.0
    %49 = vmatpush.msra.mxu0 0.0
    %50 = vmatpush.msra.mxu0 %v26
    %51 = vmatpush.msra.mxu0 %v25
    %52 = vmatpush.msra.mxu0 %v24
    %53 = vmatpush.msra.mxu0 %v23
    %54 = vmatmul.f32.gmra.mxu0 %v33
    %v55 = vpop.f32.mrf.mxu0
    %v56 = vadd.f32 %v29, %v55
    %57 = vmatmul.f32.gmra.mxu0 %v36
    %v58 = vpop.f32.mrf.mxu0
    %v59 = vadd.f32 %v29, %v58
    %60 = vdwg.mxu0
    %v61 = vxor.u32 %v56, 2147483648
    %v62 = vxor.u32 %v59, 2147483648
    %v63 = vmul.f32 %v61, 1.442695
    %v64 = vpow.pop %v63
    %v65 = vmul.f32 %v62, 1.442695
    %v66 = vpow.pop %v65
    %v67 = vadd.f32 %v64, 1.0
    %v68 = vadd.f32 %v66, 1.0
    %v69 = vrcp.pop %v67
    %v70 = vmul.f32 %v67, %v69
    %v71 = vsub.f32 1.0, %v70
    %v72 = vmul.f32 %v69, %v71
    %v73 = vadd.f32 %v69, %v72
    %vm74 = vweird.f32 %v67
    %vm75 = vweird.f32 %v69
    %vm76 = vmor %vm74, %vm75
    %v77 = vsel %vm76, %v69, %v73
    %v78 = vand.u32 2147483647, %v67
    %vm79 = vcmp.eq.f32.partialorder %v78, 8.507059e+37
    %v80 = vand.u32 %v67, 2147483648
    %v81 = vor.u32 1.1754944e-38, %v80
    %v82 = vsel %vm79, %v81, %v77
    %v83 = vmul.f32 1.0, %v82
    %v84 = vrcp.pop %v68
    %v85 = vmul.f32 %v68, %v84
    %v86 = vsub.f32 1.0, %v85
    %v87 = vmul.f32 %v84, %v86
    %v88 = vadd.f32 %v84, %v87
    %vm89 = vweird.f32 %v68
    %vm90 = vweird.f32 %v84
    %vm91 = vmor %vm89, %vm90
    %v92 = vsel %vm91, %v84, %v88
    %v93 = vand.u32 2147483647, %v68
    %vm94 = vcmp.eq.f32.partialorder %v93, 8.507059e+37
    %v95 = vand.u32 %v68, 2147483648
    %v96 = vor.u32 1.1754944e-38, %v95
    %v97 = vsel %vm94, %v96, %v92
    %v98 = vmul.f32 1.0, %v97
    %v99 = vmul.f32 %v56, %v83
    %v100 = vmul.f32 %v59, %v98
    %103 = vrot.lane.b32.xlu0 %v56, 64
    %v104 = vpop.permute.xlu0 %103
    %105 = vrot.lane.b32.xlu0 %v59, 64
    %v106 = vpop.permute.xlu0 %105
    %v109 = vmul.f32 %v99, %v104
    %v110 = vmul.f32 %v100, %v106
    %v111 = vld [vmem:[%s3] sm:$0xff]
    %v112 = vld [vmem:[%s3 + $0x8] sm:$0xff]
    %v113 = vld [vmem:[%s3 + $0x10] sm:$0xff]
    %v114 = vld [vmem:[%s3 + $0x18] sm:$0xff]
    %v115 = vld [vmem:[%s3 + $0x20] sm:$0xff]
    %v116 = vld [vmem:[%s3 + $0x28] sm:$0xff]
    %v117 = vld [vmem:[%s3 + $0x30] sm:$0xff]
    %v118 = vld [vmem:[%s3 + $0x38] sm:$0xff]
    %vm119 = vcmask 523264
    %v121 = vsel %vm119, %v109, 0
    %v124 = vsel %vm119, %v110, 0
    %126 = vmatpush.msra.mxu0 0.0
    %127 = vmatpush.msra.mxu0 0.0
    %128 = vmatpush.msra.mxu0 0.0
    %129 = vmatpush.msra.mxu0 0.0
    %130 = vmatpush.msra.mxu0 0.0
    %131 = vmatpush.msra.mxu0 0.0
    %132 = vmatpush.msra.mxu0 0.0
    %133 = vmatpush.msra.mxu0 0.0
    %134 = vmatpush.msra.mxu0 %v118
    %135 = vmatpush.msra.mxu0 %v117
    %136 = vmatpush.msra.mxu0 %v116
    %137 = vmatpush.msra.mxu0 %v115
    %138 = vmatpush.msra.mxu0 %v114
    %139 = vmatpush.msra.mxu0 %v113
    %140 = vmatpush.msra.mxu0 %v112
    %141 = vmatpush.msra.mxu0 %v111
    %142 = vmatmul.f32.gmra.mxu0 %v121
    %v143 = vpop.f32.mrf.mxu0
    %v144 = vadd.f32 0.0, %v143
    %145 = vmatmul.f32.gmra.mxu0 %v124
    %v146 = vpop.f32.mrf.mxu0
    %v147 = vadd.f32 0.0, %v146
    %148 = vdwg.mxu0
    %p149 = scmp.eq.s32.totalorder 0, 0
    // Predicated region
    $region22: #{tpu_custom_call.1} parent=1 // pred_check
      %p150 = pneg %p149
    $region23: #{tpu_custom_call.1} parent=1 // pred_check_branch
      %152 = sbr.rel (%p150) target = $region25
    $region24: #{tpu_custom_call.1} parent=1 // pred_region
      %153 = vst.msk [vmem:[#allocation2] sm:$0xff] %vm31, %v144
      %154 = vst.msk [vmem:[#allocation2 + $0x8] sm:$0xff] %vm31, %v147
    $region25: #{tpu_custom_call.1} parent=1 // pred_fallthru
      _
    %p155 = scmp.gt.s32.totalorder 0, 0
    // Predicated region
    $region26: #{tpu_custom_call.1} parent=1 // pred_check
      %p156 = pneg %p155
    $region27: #{tpu_custom_call.1} parent=1 // pred_check_branch
      %158 = sbr.rel (%p156) target = $region29
    $region28: #{tpu_custom_call.1} parent=1 // pred_region
      %v159 = vld [vmem:[#allocation2] sm:$0xff]
      %v160 = vld [vmem:[#allocation2 + $0x8] sm:$0xff]
      %v161 = vadd.f32 %v159, %v144
      %v162 = vadd.f32 %v160, %v147
      %163 = vst.msk [vmem:[#allocation2] sm:$0xff] %vm31, %v161
      %164 = vst.msk [vmem:[#allocation2 + $0x8] sm:$0xff] %vm31, %v162
    $region29: #{tpu_custom_call.1} parent=1 // pred_fallthru
      _
    // Predicated region
    $region30: #{tpu_custom_call.1} parent=1 // pred_check
      %p165 = pneg %p149
    $region31: #{tpu_custom_call.1} parent=1 // pred_check_branch
      %167 = sbr.rel (%p165) target = $region33
    $region32: #{tpu_custom_call.1} parent=1 // pred_region
      %v168 = vld [vmem:[#allocation2] sm:$0xff]
      %v169 = vld [vmem:[#allocation2 + $0x8] sm:$0xff]
      %v170 = vld [vmem:[%s4] sm:$0x1]
      %v172 = vperm.slane %v170, 0
      %v174 = vadd.f32 %v168, %v172
      %v175 = vadd.f32 %v169, %v172
      %176 = vst.msk [vmem:[#allocation3] sm:$0xff] %vm31, %v174
      %177 = vst.msk [vmem:[#allocation3 + $0x8] sm:$0xff] %vm31, %v175
    $region33: #{tpu_custom_call.1} parent=1 // pred_fallthru
      _
    // Predicated region
    $region34: #{tpu_custom_call.1} parent=1 // pred_check
      _
    $region35: #{tpu_custom_call.1} parent=1 // pred_check_branch
      %179 = sbr.rel (0) target = $region37
    $region36: #{tpu_custom_call.1} parent=1 // pred_region
      %181 = vsyncadd [#allocation4], 0
      %s182 = sshll.u32 [#allocation3], 4
      %s183 = int_to_ptr.vmem [resolvable:$true] %s182
      %s184 = sshll.u32 %s5, 4
      %s185 = int_to_ptr.hbm [resolvable:$true] %s184
      %190 = dma.vmem_to_hbm [thread:$0]  %s183, 256, %s185, [#allocation4], 128, 128, 8
    $region37: #{tpu_custom_call.1} parent=1 // pred_fallthru
      _
    // Predicated region
    $region38: #{tpu_custom_call.1} parent=1 // pred_check
      _
    $region39: #{tpu_custom_call.1} parent=1 // pred_check_branch
      %192 = sbr.rel (0) target = $region41
    $region40: #{tpu_custom_call.1} parent=1 // pred_region
      %194 = dma.done [#allocation4], 256
    $region41: #{tpu_custom_call.1} parent=1 // pred_fallthru
      _
    %195 = vsyncpa [#allocation4], 1

</llo_original>
